<compile_context>
chip_gen: v7x
topology: tpu7x:2x2x1
jax: 0.10.0
libtpu: 0.0.40
codegen_flags: <defaults>
</compile_context>

<pallas_src>
import functools
import math

import jax
import jax.numpy as jnp
import numpy as np
from jax.experimental import pallas as pl
from jax.experimental.pallas import tpu as pltpu


def _round_up(a, b):
    return (a + b - 1) // b * b


# ---------------------------------------------------------------------------
# Pallas kernel: one fused MXU matmul, full-width VPU math, XLU roll reductions,
# one permutation matmul, one unmasked lane-dense store.
# ---------------------------------------------------------------------------
def _vn_relu_kernel(x_ref, wu_ref, beta_ref, perm_ref, o_ref, *, k, dim_out,
                    negative_slope, eps, cn_eps):
    """Layouts (all 2-D, lane-dense):
         x_ref:    (TM, dim_in*k)           lane = j*k + c  (j = in-chan, c = coord)
         wu_ref:   (dim_in*k, 2*k*dim_out)  rows permuted to (j,c); cols coord-major
         beta_ref: (1, k*dim_out)           beta replicated across coord groups
         perm_ref: (k*dim_out, k*dim_out)   lane perm: coord-major -> (dim_out,k)-interleaved
         o_ref:    (TM, dim_out*k)          lane = o*k + c
    """
    D = dim_out
    span = k * D

    # Single fused MXU matmul: first span lanes = x_proj, last span lanes = K (directions),
    # both in coordinate-major lane order (lane = c*D + o).
    y = jnp.dot(x_ref[...], wu_ref[...], preferred_element_type=jnp.float32)
    xp = y[:, :span]          # (TM, span)
    kd = y[:, span:]          # (TM, span)

    def ksum(v):
        # Sum over the k coordinate groups; result replicated across all k groups
        # (XLU lane rolls -> free slot; wraps at the logical lane size span = k*D).
        if k & (k - 1) == 0:                      # power-of-two k: butterfly
            shift = span // 2
            while shift >= D:
                v = v + pltpu.roll(v, shift=shift, axis=1)
                shift //= 2
            return v
        acc = v                                   # generic k: linear chain of rolls
        for s in range(1, k):
            acc = acc + pltpu.roll(v, shift=s * D, axis=1)
        return acc

    # ---- CoordNorm (nonlin = Identity), all math at full (TM, span) lane width ----
    norms = jnp.sqrt(ksum(xp * xp))                          # ||x_proj_o||, replicated over c
    mean_norm = jnp.mean(norms, axis=1, keepdims=True)       # mean over channels (replication-safe)
    g = (beta_ref[...] * norms) / ((norms + cn_eps) * (mean_norm + cn_eps))
    q = xp * g                                               # Q, coordinate-major lanes

    # ---- VN leaky-ReLU:  out = Q - (1 - slope) * min(<Q,K>, 0) * K / (||K|| + eps) ----
    qk = ksum(q * kd)                                        # <Q,K>, replicated over c
    knorm = jnp.sqrt(ksum(kd * kd))                          # ||K||, replicated over c
    f = (1.0 - negative_slope) * jnp.minimum(qk, 0.0) / (knorm + eps)
    out = q - f * kd                                         # (TM, span), coord-major lanes

    # Lane permutation to (dim_out, k)-interleaved order via one small MXU matmul so the
    # caller's reshape back to (..., dim_out, k) is layout-free.  Single unmasked store.
    o_ref[...] = jnp.dot(out, perm_ref[...],
                         preferred_element_type=jnp.float32).astype(o_ref.dtype)


# ---------------------------------------------------------------------------
# Wrapper: layout plumbing (all folded into small constants) + pallas_call
# ---------------------------------------------------------------------------
def vn_relu_abc(x, U, W, beta, *, negative_slope, eps, cn_eps=1e-8, tile_m=2048):
    """x: (..., dim_in, k) in the PyTorch convention. Returns (..., dim_out, k)."""
    *batch, dim_in, k = x.shape
    in_dtype = x.dtype
    if W is None:                                # map_feats=False -> identity projection
        W = jnp.eye(dim_in, dtype=jnp.float32)
    dim_out = W.shape[0]
    if U.shape[0] == 1 and dim_out > 1:          # share_nonlinearity: one shared direction
        U = jnp.broadcast_to(U, (dim_out, dim_in))

    m_total = math.prod(batch) if batch else 1
    span_in = dim_in * k
    span_out = dim_out * k

    # Lane-dense input: plain reshape (no transpose, no extra HBM pass). lane = j*k + c.
    x2 = x.reshape(m_total, span_in).astype(jnp.float32)

    # Fused block-diagonal weights [kron(I_k, W^T) | kron(I_k, U^T)], then permute ROWS
    # from (c, j) order to the input's (j, c) lane order — done once on a 128x256 constant.
    eye_k = jnp.eye(k, dtype=jnp.float32)
    wu = jnp.concatenate([jnp.kron(eye_k, W.T.astype(jnp.float32)),
                          jnp.kron(eye_k, U.T.astype(jnp.float32))], axis=1)
    wu = wu.reshape(k, dim_in, 2 * span_out).transpose(1, 0, 2).reshape(span_in, 2 * span_out)

    # beta replicated across the k coordinate groups (matches the coord-major xp lanes).
    beta_rep = jnp.tile(beta.reshape(1, dim_out).astype(jnp.float32), (1, k))

    # Output lane permutation matrix: coord-major (c*dim_out + o) -> interleaved (o*k + c).
    src = np.arange(span_out)
    perm_np = np.zeros((span_out, span_out), dtype=np.float32)
    perm_np[src, (src % dim_out) * k + (src // dim_out)] = 1.0
    perm = jnp.asarray(perm_np)

    # Row tile: multiple of 8, clamped to the problem size; ragged tail handled by Pallas
    # edge-block masking (no whole-array jnp.pad copy).
    tile_m_eff = max(8, min(_round_up(tile_m, 8), _round_up(m_total, 8)))
    grid_m = pl.cdiv(m_total, tile_m_eff)

    kernel = functools.partial(
        _vn_relu_kernel, k=k, dim_out=dim_out,
        negative_slope=float(negative_slope), eps=float(eps), cn_eps=float(cn_eps))

    out2 = pl.pallas_call(
        kernel,
        out_shape=jax.ShapeDtypeStruct((m_total, span_out), jnp.float32),
        grid_spec=pltpu.PrefetchScalarGridSpec(
            num_scalar_prefetch=0,
            grid=(grid_m,),
            in_specs=[
                pl.BlockSpec((tile_m_eff, span_in), lambda m: (m, 0)),
                pl.BlockSpec((span_in, 2 * span_out), lambda m: (0, 0)),
                pl.BlockSpec((1, span_out), lambda m: (0, 0)),
                pl.BlockSpec((span_out, span_out), lambda m: (0, 0)),
            ],
            out_specs=pl.BlockSpec((tile_m_eff, span_out), lambda m: (m, 0)),
        ),
        compiler_params=pltpu.CompilerParams(
            dimension_semantics=("parallel",),
            # 48 MiB: well above the 16/32 MiB scoped defaults, below v7x's 64 MiB/TC.
            vmem_limit_bytes=48 * 1024 * 1024,
        ),
    )(x2, wu, beta_rep, perm)

    # Lanes are already (dim_out, k)-interleaved -> pure reshape, no transpose pass.
    out = out2.reshape(*batch, dim_out, k)
    return out.astype(in_dtype)


# ---------------------------------------------------------------------------
# Pure-JAX reference (same semantics as the PyTorch forward)
# ---------------------------------------------------------------------------
def vn_relu_abc_ref(x, U, W, beta, *, negative_slope, eps, cn_eps=1e-8):
    hp = jax.lax.Precision.HIGHEST
    x_proj = x if W is None else jnp.einsum('ij,...jk->...ik', W, x, precision=hp)
    norms = jnp.linalg.norm(x_proj, axis=-1, keepdims=True)
    mean_norm = jnp.mean(norms, axis=-2, keepdims=True)
    q = (x_proj / (norms + cn_eps)) * (beta[..., None] * norms / (mean_norm + cn_eps))

    k_dir = jnp.einsum('ij,...jk->...ik', U, x, precision=hp)
    qk = jnp.sum(q * k_dir, axis=-1, keepdims=True)
    k_normed = k_dir / (jnp.linalg.norm(k_dir, axis=-1, keepdims=True) + eps)
    mask = (qk >= 0).astype(x.dtype)
    resid = 0.0 if negative_slope == 0.0 else negative_slope * q
    return resid + (1.0 - negative_slope) * (q * mask + (1.0 - mask) * (q - qk * k_normed))


if __name__ == "__main__":
    # Module config (small, consistent with the forward): dim_in=dim_out=32, k=4
    dim_in, dim_out = 32, 32
    n_dims = 4                 # k (coordinate dimension)
    negative_slope = 0.2
    eps = 1e-6
    init_eps = 1e-2            # init scale for U / W (repo's EPS default is degenerate here)
    beta_init = 0.1

    key = jax.random.PRNGKey(0)
    kx, kw, ku, kx2 = jax.random.split(key, 4)

    # Tolerance: kernel math is exact f32 (no approx reciprocals anymore); the bound only
    # needs to absorb MXU f32-matmul-pass vs. XLA einsum precision differences, while still
    # catching any lane-permutation / layout bug (which would produce O(1e-1) errors).
    RTOL, ATOL = 1e-2, 1e-3

    # Case 1: map_feats=True, share_nonlinearity=False  (B=2, N=8 -> M=16 rows)
    B, N = 2, 8
    x = jax.random.normal(kx, (B, N, dim_in, n_dims), dtype=jnp.float32)
    W = init_eps * jax.random.normal(kw, (dim_out, dim_in), dtype=jnp.float32)
    U = init_eps * jax.random.normal(ku, (dim_out, dim_in), dtype=jnp.float32)
    beta = beta_init * jnp.ones((dim_out,), dtype=jnp.float32)

    out = jax.block_until_ready(
        vn_relu_abc(x, U, W, beta, negative_slope=negative_slope, eps=eps))
    ref = vn_relu_abc_ref(x, U, W, beta, negative_slope=negative_slope, eps=eps)
    np.testing.assert_allclose(np.asarray(out), np.asarray(ref), rtol=RTOL, atol=ATOL)

    # Case 2: share_nonlinearity=True (dim_dir=1) + row count not a multiple of 8
    # (exercises the shared-direction path and the masked ragged tail — no pad copy).
    B2, N2 = 2, 7
    x_b = jax.random.normal(kx2, (B2, N2, dim_in, n_dims), dtype=jnp.float32)
    U1 = init_eps * jax.random.normal(ku, (1, dim_in), dtype=jnp.float32)
    out_b = jax.block_until_ready(
        vn_relu_abc(x_b, U1, W, beta, negative_slope=negative_slope, eps=eps))
    ref_b = vn_relu_abc_ref(x_b, U1, W, beta, negative_slope=negative_slope, eps=eps)
    np.testing.assert_allclose(np.asarray(out_b), np.asarray(ref_b), rtol=RTOL, atol=ATOL)

    print("KERNEL_OK")
</pallas_src>

<mosaic_0001>
module attributes {stable_mosaic.version = 11 : i64} {
  func.func @_vn_relu_kernel(%arg0: i32, %arg1: memref<16x128xf32, #tpu.memory_space<vmem>>, %arg2: memref<128x256xf32, #tpu.memory_space<vmem>>, %arg3: memref<1x128xf32, #tpu.memory_space<vmem>>, %arg4: memref<128x128xf32, #tpu.memory_space<vmem>>, %arg5: memref<16x128xf32, #tpu.memory_space<vmem>>) attributes {dimension_semantics = [#tpu.dimension_semantics<parallel>], iteration_bounds = array<i64: 1>, scalar_prefetch = 0 : i64, scratch_operands = 0 : i64, tpu.core_type = #tpu.core_type<tc>, window_params = [{transform_indices = @transform_0, window_bounds = array<i64: 16, 128>}, {pipeline_mode = #tpu.pipeline_mode<synchronous>, transform_indices = @transform_1, window_bounds = array<i64: 128, 256>}, {pipeline_mode = #tpu.pipeline_mode<synchronous>, transform_indices = @transform_2, window_bounds = array<i64: 1, 128>}, {pipeline_mode = #tpu.pipeline_mode<synchronous>, transform_indices = @transform_3, window_bounds = array<i64: 128, 128>}, {transform_indices = @transform_4, window_bounds = array<i64: 16, 128>}]} {
    %c0 = arith.constant 0 : index
    %c0_0 = arith.constant 0 : index
    %0 = vector.load %arg1[%c0, %c0_0] : memref<16x128xf32, #tpu.memory_space<vmem>>, vector<16x128xf32>
    %c0_1 = arith.constant 0 : index
    %c0_2 = arith.constant 0 : index
    %1 = vector.load %arg2[%c0_1, %c0_2] : memref<128x256xf32, #tpu.memory_space<vmem>>, vector<128x256xf32>
    %cst = arith.constant dense<0.000000e+00> : vector<16x256xf32>
    %2 = tpu.matmul %0, %1, %cst {dimension_numbers = #tpu.dot_dimension_numbers<[1], [0], [0], [1], [0, 0, 1, 1], [], []>} : vector<16x128xf32>, vector<128x256xf32>, vector<16x256xf32> -> vector<16x256xf32>
    %3 = vector.extract_strided_slice %2 {offsets = [0, 0], sizes = [16, 128], strides = [1, 1]} : vector<16x256xf32> to vector<16x128xf32>
    %4 = vector.extract_strided_slice %2 {offsets = [0, 128], sizes = [16, 128], strides = [1, 1]} : vector<16x256xf32> to vector<16x128xf32>
    %5 = arith.mulf %3, %3 : vector<16x128xf32>
    %c64_i32 = arith.constant 64 : i32
    %6 = tpu.dynamic_rotate %5 by %c64_i32 dim 1 : vector<16x128xf32>, i32 -> vector<16x128xf32>
    %7 = arith.addf %5, %6 : vector<16x128xf32>
    %c32_i32 = arith.constant 32 : i32
    %8 = tpu.dynamic_rotate %7 by %c32_i32 dim 1 : vector<16x128xf32>, i32 -> vector<16x128xf32>
    %9 = arith.addf %7, %8 : vector<16x128xf32>
    %10 = math.sqrt %9 : vector<16x128xf32>
    %cst_3 = arith.constant dense<0.000000e+00> : vector<16xf32>
    %11 = vector.multi_reduction <add>, %10, %cst_3 [1] : vector<16x128xf32> to vector<16xf32>
    %12 = vector.shape_cast %11 : vector<16xf32> to vector<16x1xf32>
    %cst_4 = arith.constant 1.280000e+02 : f32
    %13 = vector.broadcast %cst_4 : f32 to vector<16x1xf32>
    %14 = arith.divf %12, %13 : vector<16x1xf32>
    %c0_5 = arith.constant 0 : index
    %c0_6 = arith.constant 0 : index
    %15 = vector.load %arg3[%c0_5, %c0_6] : memref<1x128xf32, #tpu.memory_space<vmem>>, vector<1x128xf32>
    %16 = vector.broadcast %15 : vector<1x128xf32> to vector<16x128xf32>
    %17 = arith.mulf %16, %10 : vector<16x128xf32>
    %cst_7 = arith.constant 9.99999993E-9 : f32
    %18 = vector.broadcast %cst_7 : f32 to vector<16x128xf32>
    %19 = arith.addf %10, %18 : vector<16x128xf32>
    %cst_8 = arith.constant 9.99999993E-9 : f32
    %20 = vector.broadcast %cst_8 : f32 to vector<16x1xf32>
    %21 = arith.addf %14, %20 : vector<16x1xf32>
    %22 = vector.broadcast %21 : vector<16x1xf32> to vector<16x128xf32>
    %23 = arith.mulf %19, %22 : vector<16x128xf32>
    %24 = arith.divf %17, %23 : vector<16x128xf32>
    %25 = arith.mulf %3, %24 : vector<16x128xf32>
    %26 = arith.mulf %25, %4 : vector<16x128xf32>
    %c64_i32_9 = arith.constant 64 : i32
    %27 = tpu.dynamic_rotate %26 by %c64_i32_9 dim 1 : vector<16x128xf32>, i32 -> vector<16x128xf32>
    %28 = arith.addf %26, %27 : vector<16x128xf32>
    %c32_i32_10 = arith.constant 32 : i32
    %29 = tpu.dynamic_rotate %28 by %c32_i32_10 dim 1 : vector<16x128xf32>, i32 -> vector<16x128xf32>
    %30 = arith.addf %28, %29 : vector<16x128xf32>
    %31 = arith.mulf %4, %4 : vector<16x128xf32>
    %c64_i32_11 = arith.constant 64 : i32
    %32 = tpu.dynamic_rotate %31 by %c64_i32_11 dim 1 : vector<16x128xf32>, i32 -> vector<16x128xf32>
    %33 = arith.addf %31, %32 : vector<16x128xf32>
    %c32_i32_12 = arith.constant 32 : i32
    %34 = tpu.dynamic_rotate %33 by %c32_i32_12 dim 1 : vector<16x128xf32>, i32 -> vector<16x128xf32>
    %35 = arith.addf %33, %34 : vector<16x128xf32>
    %36 = math.sqrt %35 : vector<16x128xf32>
    %cst_13 = arith.constant 0.000000e+00 : f32
    %37 = vector.broadcast %cst_13 : f32 to vector<16x128xf32>
    %38 = arith.minimumf %30, %37 : vector<16x128xf32>
    %cst_14 = arith.constant 8.000000e-01 : f32
    %39 = vector.broadcast %cst_14 : f32 to vector<16x128xf32>
    %40 = arith.mulf %39, %38 : vector<16x128xf32>
    %cst_15 = arith.constant 9.99999997E-7 : f32
    %41 = vector.broadcast %cst_15 : f32 to vector<16x128xf32>
    %42 = arith.addf %36, %41 : vector<16x128xf32>
    %43 = arith.divf %40, %42 : vector<16x128xf32>
    %44 = arith.mulf %43, %4 : vector<16x128xf32>
    %45 = arith.subf %25, %44 : vector<16x128xf32>
    %c0_16 = arith.constant 0 : index
    %c0_17 = arith.constant 0 : index
    %46 = vector.load %arg4[%c0_16, %c0_17] : memref<128x128xf32, #tpu.memory_space<vmem>>, vector<128x128xf32>
    %cst_18 = arith.constant dense<0.000000e+00> : vector<16x128xf32>
    %47 = tpu.matmul %45, %46, %cst_18 {dimension_numbers = #tpu.dot_dimension_numbers<[1], [0], [0], [1], [0, 0, 1, 1], [], []>} : vector<16x128xf32>, vector<128x128xf32>, vector<16x128xf32> -> vector<16x128xf32>
    %c0_19 = arith.constant 0 : index
    %c0_20 = arith.constant 0 : index
    %48 = vector.load %arg5[%c0_19, %c0_20] : memref<16x128xf32, #tpu.memory_space<vmem>>, vector<16x128xf32>
    tpu.vector_store %arg5[%c0_19, %c0_20], %47 {strides = array<i32>} : memref<16x128xf32, #tpu.memory_space<vmem>>, vector<16x128xf32>,
    return
  }
  func.func @transform_0(%arg0: i32) -> (i32, i32) {
    %c0_i32 = arith.constant 0 : i32
    %c0_i32_0 = arith.constant 0 : i32
    return %arg0, %c0_i32 : i32, i32
  }
  func.func @transform_1(%arg0: i32) -> (i32, i32) {
    %c0_i32 = arith.constant 0 : i32
    %c0_i32_0 = arith.constant 0 : i32
    %c0_i32_1 = arith.constant 0 : i32
    return %c0_i32, %c0_i32_0 : i32, i32
  }
  func.func @transform_2(%arg0: i32) -> (i32, i32) {
    %c0_i32 = arith.constant 0 : i32
    %c0_i32_0 = arith.constant 0 : i32
    %c0_i32_1 = arith.constant 0 : i32
    return %c0_i32, %c0_i32_0 : i32, i32
  }
  func.func @transform_3(%arg0: i32) -> (i32, i32) {
    %c0_i32 = arith.constant 0 : i32
    %c0_i32_0 = arith.constant 0 : i32
    %c0_i32_1 = arith.constant 0 : i32
    return %c0_i32, %c0_i32_0 : i32, i32
  }
  func.func @transform_4(%arg0: i32) -> (i32, i32) {
    %c0_i32 = arith.constant 0 : i32
    %c0_i32_0 = arith.constant 0 : i32
    return %arg0, %c0_i32 : i32, i32
  }
}

</mosaic_0001>

<llo_original>
// kernel: tpu_custom_call.1
$region0: #{tpu_custom_call.1}
  #allocation0 [shape = 'u32[]', space=smem, size = 0x4, offset = 0x4, fixed_abs, tag = 'smem constant byte address 0x4 - core index']
  #allocation1 [shape = 'u32[144,128]{1,0:T(1,128)}', space=vmem, size = 0x12000, scoped, tag = 'internal scratch']
  %s0 = inlined_call_operand.hbm [shape: f32[16,128], index: 0, kind: input, shape index: {}]
  %s1 = inlined_call_operand.hbm [shape: f32[128,256], index: 1, kind: input, shape index: {}]
  %s2 = inlined_call_operand.vmem [shape: f32[1,128], index: 2, kind: input, shape index: {}]
  %s3 = inlined_call_operand.hbm [shape: f32[128,128], index: 3, kind: input, shape index: {}]
  %s4 = inlined_call_operand.hbm [shape: f32[16,128], index: 4, kind: output, shape index: {}]
  %s5 = sld [smem:[#allocation0]]
  $region38: #{tpu_custom_call.1} parent=0
    _
  %s7 = ssub.s32 1, %s5
  %s8 = scalar_select 0, %s7, %s5
  $region1: #{tpu_custom_call.1} parent=0
    #allocation2 [shape = 'u8[8192]{0}', space=vmem, size = 0x2000, scoped, tag = 'input window, operand 0, single buffered']
    #allocation3 [shape = 's32[1]{0}', space=sflag, size = 0x4, scoped, tag = 'scoped memory for tpu_custom_call.1']
    #allocation4 [shape = 's32[1]{0}', space=sflag, size = 0x4, scoped, tag = 'scoped memory for tpu_custom_call.1']
    #allocation5 [shape = 'u8[131072]{0}', space=vmem, size = 0x20000, scoped, tag = 'input window, operand 1, single buffered']
    #allocation6 [shape = 's32[1]{0}', space=sflag, size = 0x4, scoped, tag = 'scoped memory for tpu_custom_call.1']
    #allocation7 [shape = 'u8[65536]{0}', space=vmem, size = 0x10000, scoped, tag = 'input window, operand 3, single buffered']
    #allocation8 [shape = 'u8[8192]{0}', space=vmem, size = 0x2000, scoped, tag = 'output window, operand 0, single buffered']
    %9 = vsyncpa [#allocation3], 0
    %10 = vsyncpa [#allocation6], 0
    %11 = vsyncpa [#allocation4], 0
    // Predicated region
    $region2: #{tpu_custom_call.1} parent=1 // pred_check
      _
    $region3: #{tpu_custom_call.1} parent=1 // pred_check_branch
      %13 = sbr.rel (0) target = $region5
    $region4: #{tpu_custom_call.1} parent=1 // pred_region
      %s15 = ssub.s32 256, 256
      %16 = vsyncadd [#allocation3], %s15
      %s17 = sshll.u32 [#allocation2], 4
      %s18 = int_to_ptr.vmem [resolvable:$true] %s17
      %23 = dma.hbm_to_vmem [thread:$0]  %s0, 256, %s18, [#allocation3], 128, 128, 8
    $region5: #{tpu_custom_call.1} parent=1 // pred_fallthru
      _
    // Predicated region
    $region6: #{tpu_custom_call.1} parent=1 // pred_check
      _
    $region7: #{tpu_custom_call.1} parent=1 // pred_check_branch
      %25 = sbr.rel (0) target = $region9
    $region8: #{tpu_custom_call.1} parent=1 // pred_region
      %s27 = ssub.s32 4096, 4096
      %28 = vsyncadd [#allocation6], %s27
      %s29 = sshll.u32 [#allocation5], 4
      %s30 = int_to_ptr.vmem [resolvable:$true] %s29
      %35 = dma.hbm_to_vmem [thread:$0]  %s1, 4096, %s30, [#allocation6], 256, 256, 16
    $region9: #{tpu_custom_call.1} parent=1 // pred_fallthru
      _
    // Predicated region
    $region10: #{tpu_custom_call.1} parent=1 // pred_check
      _
    $region11: #{tpu_custom_call.1} parent=1 // pred_check_branch
      %37 = sbr.rel (0) target = $region13
    $region12: #{tpu_custom_call.1} parent=1 // pred_region
      _
    $region13: #{tpu_custom_call.1} parent=1 // pred_fallthru
      _
    // Predicated region
    $region14: #{tpu_custom_call.1} parent=1 // pred_check
      _
    $region15: #{tpu_custom_call.1} parent=1 // pred_check_branch
      %39 = sbr.rel (0) target = $region17
    $region16: #{tpu_custom_call.1} parent=1 // pred_region
      %s41 = ssub.s32 2048, 2048
      %42 = vsyncadd [#allocation6], %s41
      %s43 = sshll.u32 [#allocation7], 4
      %s44 = int_to_ptr.vmem [resolvable:$true] %s43
      %49 = dma.hbm_to_vmem [thread:$0]  %s3, 2048, %s44, [#allocation6], 128, 128, 8
    $region17: #{tpu_custom_call.1} parent=1 // pred_fallthru
      _
    // Predicated region
    $region18: #{tpu_custom_call.1} parent=1 // pred_check
      _
    $region19: #{tpu_custom_call.1} parent=1 // pred_check_branch
      %51 = sbr.rel (0) target = $region21
    $region20: #{tpu_custom_call.1} parent=1 // pred_region
      %52 = dma.done [#allocation3], 256
    $region21: #{tpu_custom_call.1} parent=1 // pred_fallthru
      _
    // Predicated region
    $region22: #{tpu_custom_call.1} parent=1 // pred_check
      _
    $region23: #{tpu_custom_call.1} parent=1 // pred_check_branch
      %54 = sbr.rel (0) target = $region25
    $region24: #{tpu_custom_call.1} parent=1 // pred_region
      %55 = dma.done [#allocation6], 4096
    $region25: #{tpu_custom_call.1} parent=1 // pred_fallthru
      _
    // Predicated region
    $region26: #{tpu_custom_call.1} parent=1 // pred_check
      _
    $region27: #{tpu_custom_call.1} parent=1 // pred_check_branch
      %57 = sbr.rel (0) target = $region29
    $region28: #{tpu_custom_call.1} parent=1 // pred_region
      %58 = dma.done [#allocation6], 2048
    $region29: #{tpu_custom_call.1} parent=1 // pred_fallthru
      _
    %v59 = vld [vmem:[#allocation2] sm:$0xff]
    %v60 = vld [vmem:[#allocation2 + $0x8] sm:$0xff]
    %v61 = vld [vmem:[#allocation5] sm:$0xff]
    %v62 = vld [vmem:[#allocation5 + $0x8] sm:$0xff]
    %v63 = vld [vmem:[#allocation5 + $0x10] sm:$0xff]
    %v64 = vld [vmem:[#allocation5 + $0x18] sm:$0xff]
    %v65 = vld [vmem:[#allocation5 + $0x20] sm:$0xff]
    %v66 = vld [vmem:[#allocation5 + $0x28] sm:$0xff]
    %v67 = vld [vmem:[#allocation5 + $0x30] sm:$0xff]
    %v68 = vld [vmem:[#allocation5 + $0x38] sm:$0xff]
    %v69 = vld [vmem:[#allocation5 + $0x40] sm:$0xff]
    %v70 = vld [vmem:[#allocation5 + $0x48] sm:$0xff]
    %v71 = vld [vmem:[#allocation5 + $0x50] sm:$0xff]
    %v72 = vld [vmem:[#allocation5 + $0x58] sm:$0xff]
    %v73 = vld [vmem:[#allocation5 + $0x60] sm:$0xff]
    %v74 = vld [vmem:[#allocation5 + $0x68] sm:$0xff]
    %v75 = vld [vmem:[#allocation5 + $0x70] sm:$0xff]
    %v76 = vld [vmem:[#allocation5 + $0x78] sm:$0xff]
    %v77 = vld [vmem:[#allocation5 + $0x80] sm:$0xff]
    %v78 = vld [vmem:[#allocation5 + $0x88] sm:$0xff]
    %v79 = vld [vmem:[#allocation5 + $0x90] sm:$0xff]
    %v80 = vld [vmem:[#allocation5 + $0x98] sm:$0xff]
    %v81 = vld [vmem:[#allocation5 + $0xa0] sm:$0xff]
    %v82 = vld [vmem:[#allocation5 + $0xa8] sm:$0xff]
    %v83 = vld [vmem:[#allocation5 + $0xb0] sm:$0xff]
    %v84 = vld [vmem:[#allocation5 + $0xb8] sm:$0xff]
    %v85 = vld [vmem:[#allocation5 + $0xc0] sm:$0xff]
    %v86 = vld [vmem:[#allocation5 + $0xc8] sm:$0xff]
    %v87 = vld [vmem:[#allocation5 + $0xd0] sm:$0xff]
    %v88 = vld [vmem:[#allocation5 + $0xd8] sm:$0xff]
    %v89 = vld [vmem:[#allocation5 + $0xe0] sm:$0xff]
    %v90 = vld [vmem:[#allocation5 + $0xe8] sm:$0xff]
    %v91 = vld [vmem:[#allocation5 + $0xf0] sm:$0xff]
    %v92 = vld [vmem:[#allocation5 + $0xf8] sm:$0xff]
    %93 = vmatprep.subr.mxu0 %v62
    %94 = vmatpush1.msra.mxu0 %v61
    %95 = vmatprep.subr.mxu0 %v64
    %96 = vmatpush1.msra.mxu0 %v63
    %97 = vmatprep.subr.mxu0 %v66
    %98 = vmatpush1.msra.mxu0 %v65
    %99 = vmatprep.subr.mxu0 %v68
    %100 = vmatpush1.msra.mxu0 %v67
    %101 = vmatprep.subr.mxu0 %v70
    %102 = vmatpush1.msra.mxu0 %v69
    %103 = vmatprep.subr.mxu0 %v72
    %104 = vmatpush1.msra.mxu0 %v71
    %105 = vmatprep.subr.mxu0 %v74
    %106 = vmatpush1.msra.mxu0 %v73
    %107 = vmatprep.subr.mxu0 %v76
    %108 = vmatpush1.msra.mxu0 %v75
    %109 = vmatprep.subr.mxu0 %v78
    %110 = vmatpush1.msra.mxu0 %v77
    %111 = vmatprep.subr.mxu0 %v80
    %112 = vmatpush1.msra.mxu0 %v79
    %113 = vmatprep.subr.mxu0 %v82
    %114 = vmatpush1.msra.mxu0 %v81
    %115 = vmatprep.subr.mxu0 %v84
    %116 = vmatpush1.msra.mxu0 %v83
    %117 = vmatprep.subr.mxu0 %v86
    %118 = vmatpush1.msra.mxu0 %v85
    %119 = vmatprep.subr.mxu0 %v88
    %120 = vmatpush1.msra.mxu0 %v87
    %121 = vmatprep.subr.mxu0 %v90
    %122 = vmatpush1.msra.mxu0 %v89
    %123 = vmatprep.subr.mxu0 %v92
    %124 = vmatpush1.msra.mxu0 %v91
    %125 = vmatprep.subr.mxu0 0.0
    %126 = vmatpush1.msra.mxu0 0.0
    %127 = vmatprep.subr.mxu0 0.0
    %128 = vmatpush1.msra.mxu0 0.0
    %129 = vmatprep.subr.mxu0 0.0
    %130 = vmatpush1.msra.mxu0 0.0
    %131 = vmatprep.subr.mxu0 0.0
    %132 = vmatpush1.msra.mxu0 0.0
    %133 = vmatprep.subr.mxu0 0.0
    %134 = vmatpush1.msra.mxu0 0.0
    %135 = vmatprep.subr.mxu0 0.0
    %136 = vmatpush1.msra.mxu0 0.0
    %137 = vmatprep.subr.mxu0 0.0
    %138 = vmatpush1.msra.mxu0 0.0
    %139 = vmatprep.subr.mxu0 0.0
    %140 = vmatpush1.msra.mxu0 0.0
    %141 = vmatprep.subr.mxu0 0.0
    %142 = vmatpush1.msra.mxu0 0.0
    %143 = vmatprep.subr.mxu0 0.0
    %144 = vmatpush1.msra.mxu0 0.0
    %145 = vmatprep.subr.mxu0 0.0
    %146 = vmatpush1.msra.mxu0 0.0
    %147 = vmatprep.subr.mxu0 0.0
    %148 = vmatpush1.msra.mxu0 0.0
    %149 = vmatprep.subr.mxu0 0.0
    %150 = vmatpush1.msra.mxu0 0.0
    %151 = vmatprep.subr.mxu0 0.0
    %152 = vmatpush1.msra.mxu0 0.0
    %153 = vmatprep.subr.mxu0 0.0
    %154 = vmatpush1.msra.mxu0 0.0
    %155 = vmatprep.subr.mxu0 0.0
    %156 = vmatpush1.msra.mxu0 0.0
    %157 = vmatprep.mubr.f32.mxu0 0.0
    %158 = vmatmul.mubr.f32.gmra.mrb[0].mxu0 %v59
    %v159 = vpop.f32.mrb[0].mxu0
    %v160 = vadd.f32 0.0, %v159
    %v161 = vpop.f32.mrb[0].mxu0
    %v162 = vadd.f32 0.0, %v161
    %163 = vmatprep.mubr.f32.mxu0 0.0
    %164 = vmatmul.mubr.f32.gmra.mrb[0].mxu0 %v60
    %v165 = vpop.f32.mrb[0].mxu0
    %v166 = vadd.f32 0.0, %v165
    %v167 = vpop.f32.mrb[0].mxu0
    %v168 = vadd.f32 0.0, %v167
    %169 = vdwg.mxu0
    %v170 = vmul.f32 %v160, %v160
    %v171 = vmul.f32 %v166, %v166
    %172 = vrot.lane.b32.xlu0 %v170, 64
    %v173 = vpop.permute.xlu0 %172
    %174 = vrot.lane.b32.xlu0 %v171, 64
    %v175 = vpop.permute.xlu0 %174
    %v176 = vadd.f32 %v170, %v173
    %v177 = vadd.f32 %v171, %v175
    %178 = vrot.lane.b32.xlu0 %v176, 32
    %v179 = vpop.permute.xlu0 %178
    %180 = vrot.lane.b32.xlu0 %v177, 32
    %v181 = vpop.permute.xlu0 %180
    %v182 = vadd.f32 %v176, %v179
    %v183 = vadd.f32 %v177, %v181
    %v184 = vrsqrt.pop %v182
    %v185 = vmul.f32 %v182, %v184
    %vm186 = vcmp.eq.f32.partialorder %v182, inf
    %v187 = vsel %vm186, %v182, %v185
    %vm188 = vcmp.eq.f32.partialorder %v182, 0.0
    %v189 = vand.u32 %v182, 2147483648
    %v190 = vsel %vm188, %v189, %v187
    %v191 = vrsqrt.pop %v183
    %v192 = vmul.f32 %v183, %v191
    %vm193 = vcmp.eq.f32.partialorder %v183, inf
    %v194 = vsel %vm193, %v183, %v192
    %vm195 = vcmp.eq.f32.partialorder %v183, 0.0
    %v196 = vand.u32 %v183, 2147483648
    %v197 = vsel %vm195, %v196, %v194
    %198 = vadd.xlane.f32.xlu0 %v190
    %v199 = vpop.xlane.xlu0 %198
    %200 = vadd.xlane.f32.xlu0 %v197
    %v201 = vpop.xlane.xlu0 %200
    %v202 = vrcp.pop 128.0
    %v203 = vmul.f32 %v199, %v202
    %v204 = vmul.f32 %v201, %v202
    %v205 = vld [vmem:[%s2] sm:$0x1]
    %v207 = vlaneseq
    %v208 = vshrl.u32 %v207, 7
    %v209 = vsub.s32 0, %v208
    %v210 = vrot.slane %v205, %v209
    %v212 = vmul.f32 %v210, %v190
    %v213 = vmul.f32 %v210, %v197
    %v214 = vadd.f32 %v190, 1e-08
    %v215 = vadd.f32 %v197, 1e-08
    %v216 = vadd.f32 %v203, 1e-08
    %v217 = vadd.f32 %v204, 1e-08
    %v218 = vmul.f32 %v214, %v216
    %v219 = vmul.f32 %v215, %v217
    %v220 = vrcp.pop %v218
    %v221 = vmul.f32 %v212, %v220
    %v222 = vrcp.pop %v219
    %v223 = vmul.f32 %v213, %v222
    %v224 = vmul.f32 %v160, %v221
    %v225 = vmul.f32 %v166, %v223
    %v226 = vmul.f32 %v224, %v162
    %v227 = vmul.f32 %v225, %v168
    %228 = vrot.lane.b32.xlu0 %v226, 64
    %v229 = vpop.permute.xlu0 %228
    %230 = vrot.lane.b32.xlu0 %v227, 64
    %v231 = vpop.permute.xlu0 %230
    %v232 = vadd.f32 %v226, %v229
    %v233 = vadd.f32 %v227, %v231
    %234 = vrot.lane.b32.xlu0 %v232, 32
    %v235 = vpop.permute.xlu0 %234
    %236 = vrot.lane.b32.xlu0 %v233, 32
    %v237 = vpop.permute.xlu0 %236
    %v238 = vadd.f32 %v232, %v235
    %v239 = vadd.f32 %v233, %v237
    %v240 = vmul.f32 %v162, %v162
    %v241 = vmul.f32 %v168, %v168
    %242 = vrot.lane.b32.xlu0 %v240, 64
    %v243 = vpop.permute.xlu0 %242
    %244 = vrot.lane.b32.xlu0 %v241, 64
    %v245 = vpop.permute.xlu0 %244
    %v246 = vadd.f32 %v240, %v243
    %v247 = vadd.f32 %v241, %v245
    %248 = vrot.lane.b32.xlu0 %v246, 32
    %v249 = vpop.permute.xlu0 %248
    %250 = vrot.lane.b32.xlu0 %v247, 32
    %v251 = vpop.permute.xlu0 %250
    %v252 = vadd.f32 %v246, %v249
    %v253 = vadd.f32 %v247, %v251
    %v254 = vrsqrt.pop %v252
    %v255 = vmul.f32 %v252, %v254
    %vm256 = vcmp.eq.f32.partialorder %v252, inf
    %v257 = vsel %vm256, %v252, %v255
    %vm258 = vcmp.eq.f32.partialorder %v252, 0.0
    %v259 = vand.u32 %v252, 2147483648
    %v260 = vsel %vm258, %v259, %v257
    %v261 = vrsqrt.pop %v253
    %v262 = vmul.f32 %v253, %v261
    %vm263 = vcmp.eq.f32.partialorder %v253, inf
    %v264 = vsel %vm263, %v253, %v262
    %vm265 = vcmp.eq.f32.partialorder %v253, 0.0
    %v266 = vand.u32 %v253, 2147483648
    %v267 = vsel %vm265, %v266, %v264
    %v268 = vmin.f32 %v238, 0.0
    %v269 = vmin.f32 %v239, 0.0
    %v270 = vmul.f32 %v268, 0.8
    %v271 = vmul.f32 %v269, 0.8
    %v272 = vadd.f32 %v260, 1e-06
    %v273 = vadd.f32 %v267, 1e-06
    %v274 = vrcp.pop %v272
    %v275 = vmul.f32 %v270, %v274
    %v276 = vrcp.pop %v273
    %v277 = vmul.f32 %v271, %v276
    %v278 = vmul.f32 %v275, %v162
    %v279 = vmul.f32 %v277, %v168
    %v280 = vsub.f32 %v224, %v278
    %v281 = vsub.f32 %v225, %v279
    %v282 = vld [vmem:[#allocation7] sm:$0xff]
    %v283 = vld [vmem:[#allocation7 + $0x8] sm:$0xff]
    %v284 = vld [vmem:[#allocation7 + $0x10] sm:$0xff]
    %v285 = vld [vmem:[#allocation7 + $0x18] sm:$0xff]
    %v286 = vld [vmem:[#allocation7 + $0x20] sm:$0xff]
    %v287 = vld [vmem:[#allocation7 + $0x28] sm:$0xff]
    %v288 = vld [vmem:[#allocation7 + $0x30] sm:$0xff]
    %v289 = vld [vmem:[#allocation7 + $0x38] sm:$0xff]
    %v290 = vld [vmem:[#allocation7 + $0x40] sm:$0xff]
    %v291 = vld [vmem:[#allocation7 + $0x48] sm:$0xff]
    %v292 = vld [vmem:[#allocation7 + $0x50] sm:$0xff]
    %v293 = vld [vmem:[#allocation7 + $0x58] sm:$0xff]
    %v294 = vld [vmem:[#allocation7 + $0x60] sm:$0xff]
    %v295 = vld [vmem:[#allocation7 + $0x68] sm:$0xff]
    %v296 = vld [vmem:[#allocation7 + $0x70] sm:$0xff]
    %v297 = vld [vmem:[#allocation7 + $0x78] sm:$0xff]
    %298 = vmatprep.subr.mxu0 0.0
    %299 = vmatpush1.msra.mxu0 %v282
    %300 = vmatprep.subr.mxu0 0.0
    %301 = vmatpush1.msra.mxu0 %v283
    %302 = vmatprep.subr.mxu0 0.0
    %303 = vmatpush1.msra.mxu0 %v284
    %304 = vmatprep.subr.mxu0 0.0
    %305 = vmatpush1.msra.mxu0 %v285
    %306 = vmatprep.subr.mxu0 0.0
    %307 = vmatpush1.msra.mxu0 %v286
    %308 = vmatprep.subr.mxu0 0.0
    %309 = vmatpush1.msra.mxu0 %v287
    %310 = vmatprep.subr.mxu0 0.0
    %311 = vmatpush1.msra.mxu0 %v288
    %312 = vmatprep.subr.mxu0 0.0
    %313 = vmatpush1.msra.mxu0 %v289
    %314 = vmatprep.subr.mxu0 0.0
    %315 = vmatpush1.msra.mxu0 %v290
    %316 = vmatprep.subr.mxu0 0.0
    %317 = vmatpush1.msra.mxu0 %v291
    %318 = vmatprep.subr.mxu0 0.0
    %319 = vmatpush1.msra.mxu0 %v292
    %320 = vmatprep.subr.mxu0 0.0
    %321 = vmatpush1.msra.mxu0 %v293
    %322 = vmatprep.subr.mxu0 0.0
    %323 = vmatpush1.msra.mxu0 %v294
    %324 = vmatprep.subr.mxu0 0.0
    %325 = vmatpush1.msra.mxu0 %v295
    %326 = vmatprep.subr.mxu0 0.0
    %327 = vmatpush1.msra.mxu0 %v296
    %328 = vmatprep.subr.mxu0 0.0
    %329 = vmatpush1.msra.mxu0 %v297
    %330 = vmatprep.subr.mxu0 0.0
    %331 = vmatpush1.msra.mxu0 0.0
    %332 = vmatprep.subr.mxu0 0.0
    %333 = vmatpush1.msra.mxu0 0.0
    %334 = vmatprep.subr.mxu0 0.0
    %335 = vmatpush1.msra.mxu0 0.0
    %336 = vmatprep.subr.mxu0 0.0
    %337 = vmatpush1.msra.mxu0 0.0
    %338 = vmatprep.subr.mxu0 0.0
    %339 = vmatpush1.msra.mxu0 0.0
    %340 = vmatprep.subr.mxu0 0.0
    %341 = vmatpush1.msra.mxu0 0.0
    %342 = vmatprep.subr.mxu0 0.0
    %343 = vmatpush1.msra.mxu0 0.0
    %344 = vmatprep.subr.mxu0 0.0
    %345 = vmatpush1.msra.mxu0 0.0
    %346 = vmatprep.subr.mxu0 0.0
    %347 = vmatpush1.msra.mxu0 0.0
    %348 = vmatprep.subr.mxu0 0.0
    %349 = vmatpush1.msra.mxu0 0.0
    %350 = vmatprep.subr.mxu0 0.0
    %351 = vmatpush1.msra.mxu0 0.0
    %352 = vmatprep.subr.mxu0 0.0
    %353 = vmatpush1.msra.mxu0 0.0
    %354 = vmatprep.subr.mxu0 0.0
    %355 = vmatpush1.msra.mxu0 0.0
    %356 = vmatprep.subr.mxu0 0.0
    %357 = vmatpush1.msra.mxu0 0.0
    %358 = vmatprep.subr.mxu0 0.0
    %359 = vmatpush1.msra.mxu0 0.0
    %360 = vmatprep.subr.mxu0 0.0
    %361 = vmatpush1.msra.mxu0 0.0
    %362 = vmatprep.mubr.f32.mxu0 0.0
    %363 = vmatmul.mubr.f32.gmra.mrb[0].mxu0 %v280
    %v364 = vpop.f32.mrb[0].mxu0
    %v365 = vadd.f32 0.0, %v364
    %v366 = vpop.f32.mrb[0].mxu0
    %367 = vmatprep.mubr.f32.mxu0 0.0
    %368 = vmatmul.mubr.f32.gmra.mrb[0].mxu0 %v281
    %v369 = vpop.f32.mrb[0].mxu0
    %v370 = vadd.f32 0.0, %v369
    %v371 = vpop.f32.mrb[0].mxu0
    %372 = vdwg.mxu0
    %373 = vst [vmem:[#allocation8] sm:$0xff] %v365
    %374 = vst [vmem:[#allocation8 + $0x8] sm:$0xff] %v370
    // Predicated region
    $region30: #{tpu_custom_call.1} parent=1 // pred_check
      _
    $region31: #{tpu_custom_call.1} parent=1 // pred_check_branch
      %376 = sbr.rel (0) target = $region33
    $region32: #{tpu_custom_call.1} parent=1 // pred_region
      %s378 = ssub.s32 256, 256
      %379 = vsyncadd [#allocation4], %s378
      %s380 = sshll.u32 [#allocation8], 4
      %s381 = int_to_ptr.vmem [resolvable:$true] %s380
      %386 = dma.vmem_to_hbm [thread:$0]  %s381, 256, %s4, [#allocation4], 128, 128, 8
    $region33: #{tpu_custom_call.1} parent=1 // pred_fallthru
      _
    // Predicated region
    $region34: #{tpu_custom_call.1} parent=1 // pred_check
      _
    $region35: #{tpu_custom_call.1} parent=1 // pred_check_branch
      %388 = sbr.rel (0) target = $region37
    $region36: #{tpu_custom_call.1} parent=1 // pred_region
      %389 = dma.done [#allocation4], 256
    $region37: #{tpu_custom_call.1} parent=1 // pred_fallthru
      _
    %390 = vsyncpa [#allocation3], 1
    %391 = vsyncpa [#allocation6], 1
    %392 = vsyncpa [#allocation4], 1

</llo_original>
